<compile_context>
chip_gen: v7x
topology: tpu7x:2x2x1
jax: 0.10.0
libtpu: 0.0.40
codegen_flags: <defaults>
</compile_context>

<pallas_src>
import functools

import jax
import jax.numpy as jnp
from jax import lax
from jax.experimental import pallas as pl
from jax.experimental.pallas import tpu as pltpu


# dot_general dimension_numbers: contract the lane (last) axis of both
# operands ("NT" matmul) -- no explicit transposes anywhere in the kernels.
_DN_LANE = (((1,), (1,)), ((), ()))


def _inv_base_bandwidth(parts, n, kernel_mul, kernel_num):
    """Closed-form 1/bandwidth from O(N*D) statistics (in-kernel).

    sum_ij ||xi - xj||^2 = 2*n*sum_i ||xi||^2 - 2*||sum_i xi||^2
    bandwidth = sum_ij ||xi - xj||^2 / (n^2 - n) / kernel_mul**(kernel_num//2)
    """
    s1 = 0.0
    v = None
    for x in parts:
        xsq = x * x
        ones_d = jnp.ones((1, x.shape[1]), dtype=x.dtype)
        # (1, rows) squared norms on the MXU (f32 accumulation), tiny reduce.
        row_sq = lax.dot_general(ones_d, xsq, _DN_LANE,
                                 preferred_element_type=jnp.float32)
        s1 = s1 + jnp.sum(row_sq)
        col_sum = jnp.sum(x.astype(jnp.float32), axis=0, keepdims=True)  # (1, D)
        v = col_sum if v is None else v + col_sum
    sum_l2 = 2.0 * float(n) * s1 - 2.0 * jnp.sum(v * v)
    bw = sum_l2 / float(n * n - n)
    bw = bw / (kernel_mul ** (kernel_num // 2))
    # Degenerate-input guard (all rows identical): the PyTorch reference would
    # divide by zero; clamp so we return a finite loss instead of NaN.
    bw = jnp.maximum(bw, 1e-30)
    return 1.0 / bw


def _mmd_rbf_full_kernel(total_ref, out_ref, *, ns, kernel_mul, kernel_num,
                         exp_dtype):
    """Small-batch single-shot path: one lane-dense (n, n) slab (n = ns+nt)."""
    total = total_ref[...]                                   # (n, Dp)
    n = total.shape[0]
    nt = n - ns

    inv_bw0 = _inv_base_bandwidth([total], n, kernel_mul, kernel_num)

    g = lax.dot_general(total, total, _DN_LANE,
                        preferred_element_type=jnp.float32)  # (n, n)
    tsq = total * total
    ones_d = jnp.ones((1, total.shape[1]), dtype=total.dtype)
    sq_row = lax.dot_general(ones_d, tsq, _DN_LANE,
                             preferred_element_type=jnp.float32)   # (1, n)
    sq_col = lax.dot_general(tsq, ones_d, _DN_LANE,
                             preferred_element_type=jnp.float32)   # (n, 1)

    # Negated squared distances, clamped at 0 (FP-cancellation insurance).
    neg = jnp.minimum(2.0 * g - sq_col - sq_row, 0.0).astype(exp_dtype)

    k_sum = None                                             # one (n, n) f32 slab
    for i in range(kernel_num):
        scale_i = (inv_bw0 * (kernel_mul ** (-i))).astype(exp_dtype)
        e = jnp.exp(neg * scale_i).astype(jnp.float32)
        k_sum = e if k_sum is None else k_sum + e

    row_src = lax.broadcasted_iota(jnp.int32, (n, 1), 0) < ns
    col_src = lax.broadcasted_iota(jnp.int32, (1, n), 1) < ns
    s_ss = jnp.sum(jnp.where(row_src & col_src, k_sum, 0.0))
    s_tt = jnp.sum(jnp.where((~row_src) & (~col_src), k_sum, 0.0))
    s_xy = jnp.sum(k_sum) - s_ss - s_tt                      # XY + YX combined

    loss = (s_ss / float(ns * ns) + s_tt / float(nt * nt)
            - s_xy / float(ns * nt))
    out_ref[0, 0] = loss.astype(jnp.float32)


def _mmd_rbf_blocks_kernel(src_ref, tgt_ref, out_ref, *, kernel_mul, kernel_num,
                           exp_dtype):
    """Larger single-shot path: three unique blocks (SS, TT, ST) with
    scalar/vector accumulation (no live N^2 kernel-sum accumulators)."""
    xs = src_ref[...]                                        # (ns, Dp)
    xt = tgt_ref[...]                                        # (nt, Dp)
    ns, nt = xs.shape[0], xt.shape[0]
    n = ns + nt

    inv_bw0 = _inv_base_bandwidth([xs, xt], n, kernel_mul, kernel_num)

    ones_d = jnp.ones((1, xs.shape[1]), dtype=xs.dtype)
    xs_sq, xt_sq = xs * xs, xt * xt
    # Row-/column-form squared norms via MXU ones-contractions (no sq.T / XLU
    # relayout; the MXU is otherwise idle here).
    sqs_row = lax.dot_general(ones_d, xs_sq, _DN_LANE,
                              preferred_element_type=jnp.float32)   # (1, ns)
    sqt_row = lax.dot_general(ones_d, xt_sq, _DN_LANE,
                              preferred_element_type=jnp.float32)   # (1, nt)
    sqs_col = lax.dot_general(xs_sq, ones_d, _DN_LANE,
                              preferred_element_type=jnp.float32)   # (ns, 1)
    sqt_col = lax.dot_general(xt_sq, ones_d, _DN_LANE,
                              preferred_element_type=jnp.float32)   # (nt, 1)

    g_ss = lax.dot_general(xs, xs, _DN_LANE, preferred_element_type=jnp.float32)
    g_tt = lax.dot_general(xt, xt, _DN_LANE, preferred_element_type=jnp.float32)
    g_st = lax.dot_general(xs, xt, _DN_LANE, preferred_element_type=jnp.float32)

    neg_ss = jnp.minimum(2.0 * g_ss - sqs_col - sqs_row, 0.0).astype(exp_dtype)
    neg_tt = jnp.minimum(2.0 * g_tt - sqt_col - sqt_row, 0.0).astype(exp_dtype)
    neg_st = jnp.minimum(2.0 * g_st - sqs_col - sqt_row, 0.0).astype(exp_dtype)

    ones_s = jnp.ones((1, ns), dtype=exp_dtype)
    ones_t = jnp.ones((1, nt), dtype=exp_dtype)
    acc_ss = jnp.zeros((ns, 1), jnp.float32)
    acc_tt = jnp.zeros((nt, 1), jnp.float32)
    acc_st = jnp.zeros((ns, 1), jnp.float32)
    for i in range(kernel_num):
        scale_i = (inv_bw0 * (kernel_mul ** (-i))).astype(exp_dtype)
        # EUP (exp) is the saturated slot; per-iteration reductions go to the
        # otherwise-idle MXU so no N^2 array ever stays live.
        e_ss = jnp.exp(neg_ss * scale_i)
        e_tt = jnp.exp(neg_tt * scale_i)
        e_st = jnp.exp(neg_st * scale_i)
        acc_ss = acc_ss + lax.dot_general(e_ss, ones_s, _DN_LANE,
                                          preferred_element_type=jnp.float32)
        acc_tt = acc_tt + lax.dot_general(e_tt, ones_t, _DN_LANE,
                                          preferred_element_type=jnp.float32)
        acc_st = acc_st + lax.dot_general(e_st, ones_t, _DN_LANE,
                                          preferred_element_type=jnp.float32)

    s_ss = jnp.sum(acc_ss)
    s_tt = jnp.sum(acc_tt)
    s_st = jnp.sum(acc_st)                                   # XY == YX by symmetry
    loss = (s_ss / float(ns * ns) + s_tt / float(nt * nt)
            - 2.0 * s_st / float(ns * nt))
    out_ref[0, 0] = loss.astype(jnp.float32)


def _mmd_rbf_tiled_kernel(row_ref, col_ref, out_ref, *, ns, n, tile,
                          kernel_mul, kernel_num, exp_dtype):
    """Tiled-grid path over the implicit n x n kernel matrix.

    Inputs are pre-scaled by sqrt(1/bandwidth) (closed form, wrapper side), so
    in-kernel distances are already divided by the base bandwidth and the
    per-iteration scales are compile-time constants.  Row axis is "parallel"
    (megacore on v7x); column axis is "arbitrary" with a per-row-tile
    accumulator output block.
    """
    j = pl.program_id(1)

    @pl.when(j == 0)
    def _():
        out_ref[...] = jnp.zeros_like(out_ref)

    xr = row_ref[...]                                        # (tile, Dp)
    xc = col_ref[...]                                        # (tile, Dp)
    g = lax.dot_general(xr, xc, _DN_LANE, preferred_element_type=jnp.float32)

    ones_d = jnp.ones((1, xr.shape[1]), dtype=xr.dtype)
    sq_r = lax.dot_general(xr * xr, ones_d, _DN_LANE,
                           preferred_element_type=jnp.float32)      # (tile, 1)
    sq_c = lax.dot_general(ones_d, xc * xc, _DN_LANE,
                           preferred_element_type=jnp.float32)      # (1, tile)

    neg = jnp.minimum(2.0 * g - sq_r - sq_c, 0.0).astype(exp_dtype)

    k_tile = None
    for i in range(kernel_num):
        e = jnp.exp(neg * (kernel_mul ** (-i))).astype(jnp.float32)
        k_tile = e if k_tile is None else k_tile + e

    # Global row/col ids: mask padded rows/cols and split SS / TT / mixed.
    row_ids = (pl.program_id(0) * tile
               + lax.broadcasted_iota(jnp.int32, (tile, 1), 0))
    col_ids = j * tile + lax.broadcasted_iota(jnp.int32, (1, tile), 1)
    valid = (row_ids < n) & (col_ids < n)
    row_src = row_ids < ns
    col_src = col_ids < ns

    km = jnp.where(valid, k_tile, 0.0)
    s_ss = jnp.sum(jnp.where(row_src & col_src, km, 0.0))
    s_tt = jnp.sum(jnp.where((~row_src) & (~col_src), km, 0.0))
    s_xy = jnp.sum(km) - s_ss - s_tt                         # XY + YX combined

    # Pack the three partial sums into lanes 0..2 of the (1, 8, 128) output
    # block -- fully vectorized accumulate, no scalar VMEM stores.
    lane = lax.broadcasted_iota(jnp.int32, out_ref.shape, 2)
    subl = lax.broadcasted_iota(jnp.int32, out_ref.shape, 1)
    row0 = subl == 0
    contrib = (jnp.where(row0 & (lane == 0), s_ss, 0.0)
               + jnp.where(row0 & (lane == 1), s_tt, 0.0)
               + jnp.where(row0 & (lane == 2), s_xy, 0.0))
    out_ref[...] = out_ref[...] + contrib


def _round_up(x, m):
    return ((x + m - 1) // m) * m


def _vmem_limit_bytes():
    """Generation-aware VMEM request: never ask for all of physical VMEM.

    ~48 MiB on v7x (64 MiB/TC physical), ~96 MiB on v5e/v6e (128 MiB).
    """
    try:
        cap = int(getattr(pltpu.get_tpu_info(), "vmem_capacity_bytes", 0))
    except Exception:
        cap = 0
    if cap <= 0:
        return 64 * 1024 * 1024            # conservative fallback
    return min((cap * 3) // 4, 100 * 1024 * 1024)


def _mmd_rbf_tiled(source, target, kernel_mul, kernel_num, *, exp_dtype, tile,
                   vmem_limit):
    ns, d_pad = source.shape
    nt = target.shape[0]
    n = ns + nt
    tile = max(8, _round_up(tile, 8))

    total = jnp.concatenate([source, target], axis=0)        # (n, Dp)

    # Closed-form bandwidth (O(N*D), wrapper side; negligible vs N^2 work):
    #   sum_ij ||xi - xj||^2 = 2*n*sum_i||xi||^2 - 2*||sum_i xi||^2
    t32 = total.astype(jnp.float32)
    s1 = jnp.sum(t32 * t32)
    v = jnp.sum(t32, axis=0)
    sum_l2 = 2.0 * n * s1 - 2.0 * jnp.sum(v * v)
    bandwidth = sum_l2 / float(n * n - n) / (kernel_mul ** (kernel_num // 2))
    bandwidth = jnp.maximum(bandwidth, 1e-30)                 # degenerate guard
    # Fold sqrt(1/bandwidth) into the inputs (one fused O(N*D) op): distances
    # computed in-kernel are then already divided by the base bandwidth, the
    # per-bandwidth scales become static constants, and no scalar side-channel
    # into the gridded kernel is needed.
    total = (t32 * jnp.sqrt(1.0 / bandwidth)).astype(total.dtype)

    n_pad = _round_up(n, tile)
    if n_pad != n:
        total = jnp.pad(total, ((0, n_pad - n), (0, 0)))      # masked in-kernel
    grid_r = n_pad // tile

    partials = pl.pallas_call(
        functools.partial(_mmd_rbf_tiled_kernel, ns=ns, n=n, tile=tile,
                          kernel_mul=kernel_mul, kernel_num=kernel_num,
                          exp_dtype=exp_dtype),
        out_shape=jax.ShapeDtypeStruct((grid_r, 8, 128), jnp.float32),
        grid=(grid_r, grid_r),
        in_specs=[pl.BlockSpec((tile, d_pad), lambda i, j: (i, 0)),
                  pl.BlockSpec((tile, d_pad), lambda i, j: (j, 0))],
        out_specs=pl.BlockSpec((1, 8, 128), lambda i, j: (i, 0, 0)),
        compiler_params=pltpu.CompilerParams(
            dimension_semantics=("parallel", "arbitrary"),
            vmem_limit_bytes=vmem_limit),
    )(total, total)

    s_ss = jnp.sum(partials[:, 0, 0])
    s_tt = jnp.sum(partials[:, 0, 1])
    s_xy = jnp.sum(partials[:, 0, 2])
    return (s_ss / float(ns * ns) + s_tt / float(nt * nt)
            - s_xy / float(ns * nt))


def mmd_loss_rbf(source, target, kernel_mul=2.0, kernel_num=5, *,
                 bf16_exp=False, tile_rows=256, _force_impl=None):
    """JAX/Pallas equivalent of MMDLoss(kernel_type='rbf').forward(source, target).

    bf16_exp: run the EUP-bound exp loop in bf16 (v6e/v7x only; ~1e-3 relative
      error, ~1.5-2x on the dominant phase).  Off by default so results match
      the f32 reference to ~1e-5.
    """
    source = jnp.asarray(source)
    target = jnp.asarray(target).astype(source.dtype)
    assert source.ndim == 2 and target.ndim == 2
    assert source.shape[1] == target.shape[1]
    kernel_mul = float(kernel_mul)
    kernel_num = int(kernel_num)

    ns, d = source.shape
    nt = target.shape[0]
    n = ns + nt
    exp_dtype = jnp.bfloat16 if bf16_exp else jnp.float32

    # Lane-dense layout: zero-pad the feature dim to a multiple of 128 (zero
    # columns change neither the Gram nor any distance).
    d_pad = _round_up(max(d, 1), 128)
    if d_pad != d:
        pad = ((0, 0), (0, d_pad - d))
        source = jnp.pad(source, pad)
        target = jnp.pad(target, pad)

    vmem_limit = _vmem_limit_bytes()
    itemsize = jnp.dtype(source.dtype).itemsize

    # Small batches: one lane-dense (n, n) slab beats three narrow blocks.
    full_matrix = n <= 256
    if _force_impl == "single_full":
        full_matrix = True
    elif _force_impl == "single_blocks":
        full_matrix = False

    pair_elems = n * n if full_matrix else (ns * ns + nt * nt + ns * nt)
    # Rough live-VMEM estimate: neg blocks + exp temp + Gram peak (f32) plus
    # whole inputs and slack.
    est_bytes = 3 * 4 * pair_elems + n * d_pad * itemsize + (4 << 20)
    use_tiled = est_bytes > (vmem_limit * 9) // 10
    if _force_impl == "tiled":
        use_tiled = True
    elif _force_impl in ("single_full", "single_blocks"):
        use_tiled = False

    if use_tiled:
        return _mmd_rbf_tiled(source, target, kernel_mul, kernel_num,
                              exp_dtype=exp_dtype, tile=int(tile_rows),
                              vmem_limit=vmem_limit)

    cparams = pltpu.CompilerParams(vmem_limit_bytes=vmem_limit)
    if full_matrix:
        total = jnp.concatenate([source, target], axis=0)     # tiny (n <= 256)
        out = pl.pallas_call(
            functools.partial(_mmd_rbf_full_kernel, ns=ns,
                              kernel_mul=kernel_mul, kernel_num=kernel_num,
                              exp_dtype=exp_dtype),
            out_shape=jax.ShapeDtypeStruct((1, 1), jnp.float32),
            in_specs=[pl.BlockSpec(memory_space=pltpu.VMEM)],
            out_specs=pl.BlockSpec(memory_space=pltpu.SMEM),
            compiler_params=cparams,
        )(total)
    else:
        out = pl.pallas_call(
            functools.partial(_mmd_rbf_blocks_kernel,
                              kernel_mul=kernel_mul, kernel_num=kernel_num,
                              exp_dtype=exp_dtype),
            out_shape=jax.ShapeDtypeStruct((1, 1), jnp.float32),
            in_specs=[pl.BlockSpec(memory_space=pltpu.VMEM),
                      pl.BlockSpec(memory_space=pltpu.VMEM)],
            out_specs=pl.BlockSpec(memory_space=pltpu.SMEM),
            compiler_params=cparams,
        )(source, target)
    return out[0, 0]


def _mmd_loss_rbf_reference(source, target, kernel_mul=2.0, kernel_num=5):
    """Pure-JAX reference mirroring the PyTorch code (for sanity checking)."""
    total = jnp.concatenate(
        [source.astype(jnp.float32), target.astype(jnp.float32)], axis=0)
    n = total.shape[0]
    diff = total[None, :, :] - total[:, None, :]
    l2 = jnp.sum(diff * diff, axis=2)
    bandwidth = jnp.sum(l2) / (n * n - n)
    bandwidth = bandwidth / (kernel_mul ** (kernel_num // 2))
    kernels = sum(jnp.exp(-l2 / (bandwidth * kernel_mul ** i))
                  for i in range(kernel_num))
    b = source.shape[0]
    xx = jnp.mean(kernels[:b, :b])
    yy = jnp.mean(kernels[b:, b:])
    xy = jnp.mean(kernels[:b, b:])
    yx = jnp.mean(kernels[b:, :b])
    return xx + yy - xy - yx


if __name__ == "__main__":
    key = jax.random.PRNGKey(0)
    k_src, k_tgt = jax.random.split(key)

    batch_src, batch_tgt, feat = 8, 12, 32
    source = jax.random.normal(k_src, (batch_src, feat), dtype=jnp.float32)
    target = jax.random.normal(k_tgt, (batch_tgt, feat), dtype=jnp.float32) + 0.5

    ref = _mmd_loss_rbf_reference(source, target)

    # Default path (small batch -> lane-dense full-matrix single shot).
    loss = mmd_loss_rbf(source, target)
    jax.block_until_ready(loss)
    assert jnp.allclose(loss, ref, rtol=1e-4, atol=1e-4), (loss, ref)

    # Exercise the 3-unique-block single-shot path.
    loss_blocks = mmd_loss_rbf(source, target, _force_impl="single_blocks")
    jax.block_until_ready(loss_blocks)
    assert jnp.allclose(loss_blocks, ref, rtol=1e-4, atol=1e-4), (loss_blocks, ref)

    # Exercise the tiled-grid path (small tile -> 2x2 grid, covers quadrant
    # straddling and padded-row masking).
    loss_tiled = mmd_loss_rbf(source, target, _force_impl="tiled", tile_rows=16)
    jax.block_until_ready(loss_tiled)
    assert jnp.allclose(loss_tiled, ref, rtol=1e-4, atol=1e-4), (loss_tiled, ref)

    print("KERNEL_OK")
</pallas_src>

<mosaic_0001>
module attributes {stable_mosaic.version = 11 : i64} {
  func.func @_mmd_rbf_full_kernel(%arg0: memref<20x128xf32, #tpu.memory_space<vmem>>, %arg1: memref<1x1xf32, #tpu.memory_space<smem>>) attributes {dimension_semantics = [], scalar_prefetch = 0 : i64, scratch_operands = 0 : i64, tpu.core_type = #tpu.core_type<tc>} {
    %c0 = arith.constant 0 : index
    %c0_0 = arith.constant 0 : index
    %0 = vector.load %arg0[%c0, %c0_0] : memref<20x128xf32, #tpu.memory_space<vmem>>, vector<20x128xf32>
    %1 = arith.mulf %0, %0 : vector<20x128xf32>
    %cst = arith.constant 1.000000e+00 : f32
    %2 = vector.broadcast %cst : f32 to vector<1x128xf32>
    %cst_1 = arith.constant dense<0.000000e+00> : vector<1x20xf32>
    %3 = tpu.matmul %2, %1, %cst_1 {dimension_numbers = #tpu.dot_dimension_numbers<[1], [1], [0], [0], [0, 0, 1, 0], [], []>} : vector<1x128xf32>, vector<20x128xf32>, vector<1x20xf32> -> vector<1x20xf32>
    %4 = vector.shape_cast %3 : vector<1x20xf32> to vector<1x1x20xf32>
    %cst_2 = arith.constant dense<0.000000e+00> : vector<1xf32>
    %5 = vector.multi_reduction <add>, %4, %cst_2 [1, 2] : vector<1x1x20xf32> to vector<1xf32>
    %6 = vector.shape_cast %5 : vector<1xf32> to vector<1x1x1xf32>
    %7 = vector.extract %6[0, 0, 0] : f32 from vector<1x1x1xf32>
    %cst_3 = arith.constant 0.000000e+00 : f32
    %8 = arith.addf %cst_3, %7 : f32
    %cst_4 = arith.constant dense<0.000000e+00> : vector<128xf32>
    %9 = vector.multi_reduction <add>, %0, %cst_4 [0] : vector<20x128xf32> to vector<128xf32>
    %10 = vector.shape_cast %9 : vector<128xf32> to vector<1x128xf32>
    %cst_5 = arith.constant 4.000000e+01 : f32
    %11 = arith.mulf %cst_5, %8 : f32
    %12 = arith.mulf %10, %10 : vector<1x128xf32>
    %13 = vector.shape_cast %12 : vector<1x128xf32> to vector<1x1x128xf32>
    %cst_6 = arith.constant dense<0.000000e+00> : vector<1xf32>
    %14 = vector.multi_reduction <add>, %13, %cst_6 [1, 2] : vector<1x1x128xf32> to vector<1xf32>
    %15 = vector.shape_cast %14 : vector<1xf32> to vector<1x1x1xf32>
    %16 = vector.extract %15[0, 0, 0] : f32 from vector<1x1x1xf32>
    %cst_7 = arith.constant 2.000000e+00 : f32
    %17 = arith.mulf %cst_7, %16 : f32
    %18 = arith.subf %11, %17 : f32
    %cst_8 = arith.constant 3.800000e+02 : f32
    %19 = arith.divf %18, %cst_8 : f32
    %cst_9 = arith.constant 4.000000e+00 : f32
    %20 = arith.divf %19, %cst_9 : f32
    %cst_10 = arith.constant 1.000000e-30 : f32
    %21 = arith.maximumf %20, %cst_10 : f32
    %cst_11 = arith.constant 1.000000e+00 : f32
    %22 = arith.divf %cst_11, %21 : f32
    %cst_12 = arith.constant dense<0.000000e+00> : vector<20x20xf32>
    %23 = tpu.matmul %0, %0, %cst_12 {dimension_numbers = #tpu.dot_dimension_numbers<[1], [1], [0], [0], [0, 0, 1, 0], [], []>} : vector<20x128xf32>, vector<20x128xf32>, vector<20x20xf32> -> vector<20x20xf32>
    %24 = arith.mulf %0, %0 : vector<20x128xf32>
    %cst_13 = arith.constant 1.000000e+00 : f32
    %25 = vector.broadcast %cst_13 : f32 to vector<1x128xf32>
    %cst_14 = arith.constant dense<0.000000e+00> : vector<1x20xf32>
    %26 = tpu.matmul %25, %24, %cst_14 {dimension_numbers = #tpu.dot_dimension_numbers<[1], [1], [0], [0], [0, 0, 1, 0], [], []>} : vector<1x128xf32>, vector<20x128xf32>, vector<1x20xf32> -> vector<1x20xf32>
    %cst_15 = arith.constant dense<0.000000e+00> : vector<20x1xf32>
    %27 = tpu.matmul %24, %25, %cst_15 {dimension_numbers = #tpu.dot_dimension_numbers<[1], [1], [0], [0], [0, 0, 1, 0], [], []>} : vector<20x128xf32>, vector<1x128xf32>, vector<20x1xf32> -> vector<20x1xf32>
    %cst_16 = arith.constant 2.000000e+00 : f32
    %28 = vector.broadcast %cst_16 : f32 to vector<20x20xf32>
    %29 = arith.mulf %28, %23 : vector<20x20xf32>
    %30 = vector.broadcast %27 : vector<20x1xf32> to vector<20x20xf32>
    %31 = arith.subf %29, %30 : vector<20x20xf32>
    %32 = vector.broadcast %26 : vector<1x20xf32> to vector<20x20xf32>
    %33 = arith.subf %31, %32 : vector<20x20xf32>
    %cst_17 = arith.constant 0.000000e+00 : f32
    %34 = vector.broadcast %cst_17 : f32 to vector<20x20xf32>
    %35 = arith.minimumf %33, %34 : vector<20x20xf32>
    %cst_18 = arith.constant 1.000000e+00 : f32
    %36 = arith.mulf %22, %cst_18 : f32
    %37 = vector.broadcast %36 : f32 to vector<20x20xf32>
    %38 = arith.mulf %35, %37 : vector<20x20xf32>
    %39 = math.exp %38 : vector<20x20xf32>
    %cst_19 = arith.constant 5.000000e-01 : f32
    %40 = arith.mulf %22, %cst_19 : f32
    %41 = vector.broadcast %40 : f32 to vector<20x20xf32>
    %42 = arith.mulf %35, %41 : vector<20x20xf32>
    %43 = math.exp %42 : vector<20x20xf32>
    %44 = arith.addf %39, %43 : vector<20x20xf32>
    %cst_20 = arith.constant 2.500000e-01 : f32
    %45 = arith.mulf %22, %cst_20 : f32
    %46 = vector.broadcast %45 : f32 to vector<20x20xf32>
    %47 = arith.mulf %35, %46 : vector<20x20xf32>
    %48 = math.exp %47 : vector<20x20xf32>
    %49 = arith.addf %44, %48 : vector<20x20xf32>
    %cst_21 = arith.constant 1.250000e-01 : f32
    %50 = arith.mulf %22, %cst_21 : f32
    %51 = vector.broadcast %50 : f32 to vector<20x20xf32>
    %52 = arith.mulf %35, %51 : vector<20x20xf32>
    %53 = math.exp %52 : vector<20x20xf32>
    %54 = arith.addf %49, %53 : vector<20x20xf32>
    %cst_22 = arith.constant 6.250000e-02 : f32
    %55 = arith.mulf %22, %cst_22 : f32
    %56 = vector.broadcast %55 : f32 to vector<20x20xf32>
    %57 = arith.mulf %35, %56 : vector<20x20xf32>
    %58 = math.exp %57 : vector<20x20xf32>
    %59 = arith.addf %54, %58 : vector<20x20xf32>
    %60 = tpu.iota {dimensions = array<i32: 0>} : vector<20x1xi32>
    %c8_i32 = arith.constant 8 : i32
    %61 = vector.broadcast %c8_i32 : i32 to vector<20x1xi32>
    %62 = arith.cmpi slt, %60, %61 : vector<20x1xi32>
    %63 = tpu.iota {dimensions = array<i32: 1>} : vector<1x20xi32>
    %c8_i32_23 = arith.constant 8 : i32
    %64 = vector.broadcast %c8_i32_23 : i32 to vector<1x20xi32>
    %65 = arith.cmpi slt, %63, %64 : vector<1x20xi32>
    %66 = vector.broadcast %62 : vector<20x1xi1> to vector<20x20xi1>
    %67 = vector.broadcast %65 : vector<1x20xi1> to vector<20x20xi1>
    %68 = arith.andi %66, %67 : vector<20x20xi1>
    %cst_24 = arith.constant 0.000000e+00 : f32
    %69 = vector.broadcast %cst_24 : f32 to vector<20x20xf32>
    %70 = arith.select %68, %59, %69 : vector<20x20xi1>, vector<20x20xf32>
    %71 = vector.shape_cast %70 : vector<20x20xf32> to vector<1x20x20xf32>
    %cst_25 = arith.constant dense<0.000000e+00> : vector<1xf32>
    %72 = vector.multi_reduction <add>, %71, %cst_25 [1, 2] : vector<1x20x20xf32> to vector<1xf32>
    %73 = vector.shape_cast %72 : vector<1xf32> to vector<1x1x1xf32>
    %74 = vector.extract %73[0, 0, 0] : f32 from vector<1x1x1xf32>
    %cst_26 = arith.constant dense<true> : vector<20x1xi1>
    %75 = arith.xori %62, %cst_26 : vector<20x1xi1>
    %cst_27 = arith.constant dense<true> : vector<1x20xi1>
    %76 = arith.xori %65, %cst_27 : vector<1x20xi1>
    %77 = vector.broadcast %75 : vector<20x1xi1> to vector<20x20xi1>
    %78 = vector.broadcast %76 : vector<1x20xi1> to vector<20x20xi1>
    %79 = arith.andi %77, %78 : vector<20x20xi1>
    %cst_28 = arith.constant 0.000000e+00 : f32
    %80 = vector.broadcast %cst_28 : f32 to vector<20x20xf32>
    %81 = arith.select %79, %59, %80 : vector<20x20xi1>, vector<20x20xf32>
    %82 = vector.shape_cast %81 : vector<20x20xf32> to vector<1x20x20xf32>
    %cst_29 = arith.constant dense<0.000000e+00> : vector<1xf32>
    %83 = vector.multi_reduction <add>, %82, %cst_29 [1, 2] : vector<1x20x20xf32> to vector<1xf32>
    %84 = vector.shape_cast %83 : vector<1xf32> to vector<1x1x1xf32>
    %85 = vector.extract %84[0, 0, 0] : f32 from vector<1x1x1xf32>
    %86 = vector.shape_cast %59 : vector<20x20xf32> to vector<1x20x20xf32>
    %cst_30 = arith.constant dense<0.000000e+00> : vector<1xf32>
    %87 = vector.multi_reduction <add>, %86, %cst_30 [1, 2] : vector<1x20x20xf32> to vector<1xf32>
    %88 = vector.shape_cast %87 : vector<1xf32> to vector<1x1x1xf32>
    %89 = vector.extract %88[0, 0, 0] : f32 from vector<1x1x1xf32>
    %90 = arith.subf %89, %74 : f32
    %91 = arith.subf %90, %85 : f32
    %cst_31 = arith.constant 6.400000e+01 : f32
    %92 = arith.divf %74, %cst_31 : f32
    %cst_32 = arith.constant 1.440000e+02 : f32
    %93 = arith.divf %85, %cst_32 : f32
    %94 = arith.addf %92, %93 : f32
    %cst_33 = arith.constant 9.600000e+01 : f32
    %95 = arith.divf %91, %cst_33 : f32
    %96 = arith.subf %94, %95 : f32
    %c0_34 = arith.constant 0 : index
    %c0_35 = arith.constant 0 : index
    %97 = memref.load %arg1[%c0_34, %c0_35] : memref<1x1xf32, #tpu.memory_space<smem>>
    memref.store %96, %arg1[%c0_34, %c0_35] : memref<1x1xf32, #tpu.memory_space<smem>>
    return
  }
}

</mosaic_0001>

<llo_original>
// kernel: tpu_custom_call.1
$region0: #{tpu_custom_call.1}
  #allocation0 [shape = 'u32[]', space=smem, size = 0x4, offset = 0x4, fixed_abs, tag = 'smem constant byte address 0x4 - core index']
  #allocation1 [shape = 'u32[144,128]{1,0:T(1,128)}', space=vmem, size = 0x12000, scoped, tag = 'internal scratch']
  %s0 = inlined_call_operand.hbm [shape: f32[20,128], index: 0, kind: input, shape index: {}]
  %s1 = inlined_call_operand.hbm [shape: f32[1,1], index: 1, kind: output, shape index: {}]
  %s2 = sld [smem:[#allocation0]]
  $region18: #{tpu_custom_call.1} parent=0
    _
  %s4 = ssub.s32 1, %s2
  %s5 = scalar_select 0, %s4, %s2
  $region1: #{tpu_custom_call.1} parent=0
    #allocation2 [shape = 'u8[12288]{0}', space=vmem, size = 0x3000, scoped, tag = 'input window, operand 0, single buffered']
    #allocation3 [shape = 's32[1]{0}', space=sflag, size = 0x4, scoped, tag = 'scoped memory for tpu_custom_call.1']
    #allocation4 [shape = 's32[1]{0}', space=sflag, size = 0x4, scoped, tag = 'scoped memory for tpu_custom_call.1']
    #allocation5 [shape = 'u8[512]{0}', space=smem, size = 0x200, scoped, tag = 'output window, operand 0, single buffered']
    %6 = vsyncpa [#allocation3], 0
    %7 = vsyncpa [#allocation4], 0
    // Predicated region
    $region2: #{tpu_custom_call.1} parent=1 // pred_check
      _
    $region3: #{tpu_custom_call.1} parent=1 // pred_check_branch
      %9 = sbr.rel (0) target = $region5
    $region4: #{tpu_custom_call.1} parent=1 // pred_region
      %s11 = ssub.s32 384, 384
      %12 = vsyncadd [#allocation3], %s11
      %s13 = sshll.u32 [#allocation2], 4
      %s14 = int_to_ptr.vmem [resolvable:$true] %s13
      %19 = dma.hbm_to_vmem [thread:$0]  %s0, 384, %s14, [#allocation3], 128, 128, 8
    $region5: #{tpu_custom_call.1} parent=1 // pred_fallthru
      _
    // Predicated region
    $region6: #{tpu_custom_call.1} parent=1 // pred_check
      _
    $region7: #{tpu_custom_call.1} parent=1 // pred_check_branch
      %21 = sbr.rel (0) target = $region9
    $region8: #{tpu_custom_call.1} parent=1 // pred_region
      %22 = dma.done [#allocation3], 384
    $region9: #{tpu_custom_call.1} parent=1 // pred_fallthru
      _
    %v23 = vld [vmem:[#allocation2] sm:$0xff]
    %v24 = vld [vmem:[#allocation2 + $0x8] sm:$0xff]
    %v25 = vld [vmem:[#allocation2 + $0x10] sm:$0xf]
    %v26 = vmul.f32 %v23, %v23
    %v27 = vmul.f32 %v24, %v24
    %v28 = vmul.f32 %v25, %v25
    %29 = vmatprep.subr.mxu0 0.0
    %30 = vmatpush1.xpose.msra.mxu0 %v26
    %31 = vmatprep.subr.mxu0 0.0
    %32 = vmatpush1.xpose.msra.mxu0 %v27
    %33 = vmatprep.subr.mxu0 0.0
    %34 = vmatpush1.xpose.msra.mxu0 %v28
    %35 = vmatprep.subr.mxu0 0.0
    %36 = vmatpush1.xpose.msra.mxu0 0.0
    %37 = vmatprep.subr.mxu0 0.0
    %38 = vmatpush1.xpose.msra.mxu0 0.0
    %39 = vmatprep.subr.mxu0 0.0
    %40 = vmatpush1.xpose.msra.mxu0 0.0
    %41 = vmatprep.subr.mxu0 0.0
    %42 = vmatpush1.xpose.msra.mxu0 0.0
    %43 = vmatprep.subr.mxu0 0.0
    %44 = vmatpush1.xpose.msra.mxu0 0.0
    %45 = vmatprep.subr.mxu0 0.0
    %46 = vmatpush1.xpose.msra.mxu0 0.0
    %47 = vmatprep.subr.mxu0 0.0
    %48 = vmatpush1.xpose.msra.mxu0 0.0
    %49 = vmatprep.subr.mxu0 0.0
    %50 = vmatpush1.xpose.msra.mxu0 0.0
    %51 = vmatprep.subr.mxu0 0.0
    %52 = vmatpush1.xpose.msra.mxu0 0.0
    %53 = vmatprep.subr.mxu0 0.0
    %54 = vmatpush1.xpose.msra.mxu0 0.0
    %55 = vmatprep.subr.mxu0 0.0
    %56 = vmatpush1.xpose.msra.mxu0 0.0
    %57 = vmatprep.subr.mxu0 0.0
    %58 = vmatpush1.xpose.msra.mxu0 0.0
    %59 = vmatprep.subr.mxu0 0.0
    %60 = vmatpush1.xpose.msra.mxu0 0.0
    %61 = vmatprep.subr.mxu0 0.0
    %62 = vmatpush1.xpose.msra.mxu0 0.0
    %63 = vmatprep.subr.mxu0 0.0
    %64 = vmatpush1.xpose.msra.mxu0 0.0
    %65 = vmatprep.subr.mxu0 0.0
    %66 = vmatpush1.xpose.msra.mxu0 0.0
    %67 = vmatprep.subr.mxu0 0.0
    %68 = vmatpush1.xpose.msra.mxu0 0.0
    %69 = vmatprep.subr.mxu0 0.0
    %70 = vmatpush1.xpose.msra.mxu0 0.0
    %71 = vmatprep.subr.mxu0 0.0
    %72 = vmatpush1.xpose.msra.mxu0 0.0
    %73 = vmatprep.subr.mxu0 0.0
    %74 = vmatpush1.xpose.msra.mxu0 0.0
    %75 = vmatprep.subr.mxu0 0.0
    %76 = vmatpush1.xpose.msra.mxu0 0.0
    %77 = vmatprep.subr.mxu0 0.0
    %78 = vmatpush1.xpose.msra.mxu0 0.0
    %79 = vmatprep.subr.mxu0 0.0
    %80 = vmatpush1.xpose.msra.mxu0 0.0
    %81 = vmatprep.subr.mxu0 0.0
    %82 = vmatpush1.xpose.msra.mxu0 0.0
    %83 = vmatprep.subr.mxu0 0.0
    %84 = vmatpush1.xpose.msra.mxu0 0.0
    %85 = vmatprep.subr.mxu0 0.0
    %86 = vmatpush1.xpose.msra.mxu0 0.0
    %87 = vmatprep.subr.mxu0 0.0
    %88 = vmatpush1.xpose.msra.mxu0 0.0
    %89 = vmatprep.subr.mxu0 0.0
    %90 = vmatpush1.xpose.msra.mxu0 0.0
    %91 = vmatprep.subr.mxu0 0.0
    %92 = vmatpush1.xpose.msra.mxu0 0.0
    %93 = vmatprep.mubr.f32.mxu0 0.0
    %94 = vmatmul.mubr.f32.gmra.mrb[0].mxu0 1.0
    %v95 = vpop.f32.mrb[0].mxu0
    %v96 = vadd.f32 0.0, %v95
    %v97 = vpop.f32.mrb[0].mxu0
    %98 = vdwg.mxu0
    %vm99 = vcmask 155648
    %v100 = vsel %vm99, %v96, 0.0
    %101 = vadd.xlane.f32.xlu0 %v100
    %v102 = vpop.xlane.xlu0 %101
    %v103 = vrot.slane %v102, 4
    %v104 = vadd.f32 %v102, %v103
    %v105 = vrot.slane %v104, 2
    %v106 = vadd.f32 %v104, %v105
    %v107 = vrot.slane %v106, 1
    %v108 = vadd.f32 %v106, %v107
    %s109 = vtos %v108
    %s110 = sadd.f32 %s109, 0.0
    %v111 = vadd.f32 %v23, %v24
    %vm112 = vcmask 1043456
    %v113 = vsel %vm112, %v25, 0.0
    %v114 = vadd.f32 %v111, %v113
    %v115 = vrot.slane %v114, 4
    %v116 = vadd.f32 %v114, %v115
    %v117 = vrot.slane %v116, 2
    %v118 = vadd.f32 %v116, %v117
    %v119 = vrot.slane %v118, 1
    %v120 = vadd.f32 %v118, %v119
    %s121 = smul.f32 %s110, 40.0
    %v122 = vmul.f32 %v120, %v120
    %vm123 = vcmask 1040384
    %v124 = vsel %vm123, %v122, 0.0
    %125 = vadd.xlane.f32.xlu0 %v124
    %v126 = vpop.xlane.xlu0 %125
    %v127 = vrot.slane %v126, 4
    %v128 = vadd.f32 %v126, %v127
    %v129 = vrot.slane %v128, 2
    %v130 = vadd.f32 %v128, %v129
    %v131 = vrot.slane %v130, 1
    %v132 = vadd.f32 %v130, %v131
    %s133 = vtos %v132
    %s134 = smul.f32 %s133, 2.0
    %s135 = ssub.f32 %s121, %s134
    %v136 = vrcp.pop 380.0
    %s137 = vtos %v136
    %s138 = smul.f32 %s135, %s137
    %v139 = vrcp.pop 4.0
    %s140 = vtos %v139
    %s141 = smul.f32 %s138, %s140
    %s142 = smax.f32 %s141, 1e-30
    %v143 = vstv %s142
    %v144 = vrcp.pop %v143
    %s145 = vtos %v144
    %146 = vmatprep.subr.mxu0 0.0
    %147 = vmatpush1.xpose.msra.mxu0 %v23
    %148 = vmatprep.subr.mxu0 0.0
    %149 = vmatpush1.xpose.msra.mxu0 %v24
    %150 = vmatprep.subr.mxu0 0.0
    %151 = vmatpush1.xpose.msra.mxu0 %v25
    %152 = vmatprep.subr.mxu0 0.0
    %153 = vmatpush1.xpose.msra.mxu0 0.0
    %154 = vmatprep.subr.mxu0 0.0
    %155 = vmatpush1.xpose.msra.mxu0 0.0
    %156 = vmatprep.subr.mxu0 0.0
    %157 = vmatpush1.xpose.msra.mxu0 0.0
    %158 = vmatprep.subr.mxu0 0.0
    %159 = vmatpush1.xpose.msra.mxu0 0.0
    %160 = vmatprep.subr.mxu0 0.0
    %161 = vmatpush1.xpose.msra.mxu0 0.0
    %162 = vmatprep.subr.mxu0 0.0
    %163 = vmatpush1.xpose.msra.mxu0 0.0
    %164 = vmatprep.subr.mxu0 0.0
    %165 = vmatpush1.xpose.msra.mxu0 0.0
    %166 = vmatprep.subr.mxu0 0.0
    %167 = vmatpush1.xpose.msra.mxu0 0.0
    %168 = vmatprep.subr.mxu0 0.0
    %169 = vmatpush1.xpose.msra.mxu0 0.0
    %170 = vmatprep.subr.mxu0 0.0
    %171 = vmatpush1.xpose.msra.mxu0 0.0
    %172 = vmatprep.subr.mxu0 0.0
    %173 = vmatpush1.xpose.msra.mxu0 0.0
    %174 = vmatprep.subr.mxu0 0.0
    %175 = vmatpush1.xpose.msra.mxu0 0.0
    %176 = vmatprep.subr.mxu0 0.0
    %177 = vmatpush1.xpose.msra.mxu0 0.0
    %178 = vmatprep.subr.mxu0 0.0
    %179 = vmatpush1.xpose.msra.mxu0 0.0
    %180 = vmatprep.subr.mxu0 0.0
    %181 = vmatpush1.xpose.msra.mxu0 0.0
    %182 = vmatprep.subr.mxu0 0.0
    %183 = vmatpush1.xpose.msra.mxu0 0.0
    %184 = vmatprep.subr.mxu0 0.0
    %185 = vmatpush1.xpose.msra.mxu0 0.0
    %186 = vmatprep.subr.mxu0 0.0
    %187 = vmatpush1.xpose.msra.mxu0 0.0
    %188 = vmatprep.subr.mxu0 0.0
    %189 = vmatpush1.xpose.msra.mxu0 0.0
    %190 = vmatprep.subr.mxu0 0.0
    %191 = vmatpush1.xpose.msra.mxu0 0.0
    %192 = vmatprep.subr.mxu0 0.0
    %193 = vmatpush1.xpose.msra.mxu0 0.0
    %194 = vmatprep.subr.mxu0 0.0
    %195 = vmatpush1.xpose.msra.mxu0 0.0
    %196 = vmatprep.subr.mxu0 0.0
    %197 = vmatpush1.xpose.msra.mxu0 0.0
    %198 = vmatprep.subr.mxu0 0.0
    %199 = vmatpush1.xpose.msra.mxu0 0.0
    %200 = vmatprep.subr.mxu0 0.0
    %201 = vmatpush1.xpose.msra.mxu0 0.0
    %202 = vmatprep.subr.mxu0 0.0
    %203 = vmatpush1.xpose.msra.mxu0 0.0
    %204 = vmatprep.subr.mxu0 0.0
    %205 = vmatpush1.xpose.msra.mxu0 0.0
    %206 = vmatprep.subr.mxu0 0.0
    %207 = vmatpush1.xpose.msra.mxu0 0.0
    %208 = vmatprep.subr.mxu0 0.0
    %209 = vmatpush1.xpose.msra.mxu0 0.0
    %210 = vmatprep.mubr.f32.mxu0 0.0
    %211 = vmatmul.mubr.f32.gmra.mrb[0].mxu0 %v23
    %v212 = vpop.f32.mrb[0].mxu0
    %v213 = vadd.f32 0.0, %v212
    %v214 = vpop.f32.mrb[0].mxu0
    %215 = vmatprep.mubr.f32.mxu0 0.0
    %216 = vmatmul.mubr.f32.gmra.mrb[0].mxu0 %v24
    %v217 = vpop.f32.mrb[0].mxu0
    %v218 = vadd.f32 0.0, %v217
    %v219 = vpop.f32.mrb[0].mxu0
    %220 = vmatprep.mubr.f32.mxu0 0.0
    %221 = vmatmul.mubr.f32.gmra.mrb[0].mxu0 %v25
    %v222 = vpop.f32.mrb[0].mxu0
    %v223 = vadd.f32 0.0, %v222
    %v224 = vpop.f32.mrb[0].mxu0
    %225 = vdwg.mxu0
    %226 = vadd.xlane.f32.xlu0 %v26
    %v227 = vpop.xlane.xlu0 %226
    %228 = vadd.xlane.f32.xlu0 %v27
    %v229 = vpop.xlane.xlu0 %228
    %v230 = vsel %vm112, %v28, 0.0
    %231 = vadd.xlane.f32.xlu0 %v230
    %v232 = vpop.xlane.xlu0 %231
    %v233 = vmul.f32 %v213, 2.0
    %v234 = vmul.f32 %v218, 2.0
    %v235 = vmul.f32 %v223, 2.0
    %v236 = vsub.f32 %v233, %v227
    %v237 = vsub.f32 %v234, %v229
    %v238 = vsub.f32 %v235, %v232
    %v239 = vlaneseq
    %v240 = vshrl.u32 %v239, 7
    %v241 = vsub.s32 0, %v240
    %v242 = vrot.slane %v96, %v241
    %v243 = vsub.f32 %v236, %v242
    %v244 = vsub.f32 %v237, %v242
    %v245 = vsub.f32 %v238, %v242
    %v246 = vmin.f32 %v243, 0.0
    %v247 = vmin.f32 %v244, 0.0
    %v248 = vmin.f32 %v245, 0.0
    %v249 = vstv %s145
    %v250 = vmul.f32 %v246, %v249
    %v251 = vmul.f32 %v247, %v249
    %v252 = vmul.f32 %v248, %v249
    %v253 = vmul.f32 %v250, 1.442695
    %v254 = vpow.pop %v253
    %v255 = vmul.f32 %v251, 1.442695
    %v256 = vpow.pop %v255
    %v257 = vmul.f32 %v252, 1.442695
    %v258 = vpow.pop %v257
    %s259 = smul.f32 %s145, 0.5
    %v260 = vstv %s259
    %v261 = vmul.f32 %v246, %v260
    %v262 = vmul.f32 %v247, %v260
    %v263 = vmul.f32 %v248, %v260
    %v264 = vmul.f32 %v261, 1.442695
    %v265 = vpow.pop %v264
    %v266 = vmul.f32 %v262, 1.442695
    %v267 = vpow.pop %v266
    %v268 = vmul.f32 %v263, 1.442695
    %v269 = vpow.pop %v268
    %v270 = vadd.f32 %v254, %v265
    %v271 = vadd.f32 %v256, %v267
    %v272 = vadd.f32 %v258, %v269
    %s273 = smul.f32 %s145, 0.25
    %v274 = vstv %s273
    %v275 = vmul.f32 %v246, %v274
    %v276 = vmul.f32 %v247, %v274
    %v277 = vmul.f32 %v248, %v274
    %v278 = vmul.f32 %v275, 1.442695
    %v279 = vpow.pop %v278
    %v280 = vmul.f32 %v276, 1.442695
    %v281 = vpow.pop %v280
    %v282 = vmul.f32 %v277, 1.442695
    %v283 = vpow.pop %v282
    %v284 = vadd.f32 %v270, %v279
    %v285 = vadd.f32 %v271, %v281
    %v286 = vadd.f32 %v272, %v283
    %s287 = smul.f32 %s145, 0.125
    %v288 = vstv %s287
    %v289 = vmul.f32 %v246, %v288
    %v290 = vmul.f32 %v247, %v288
    %v291 = vmul.f32 %v248, %v288
    %v292 = vmul.f32 %v289, 1.442695
    %v293 = vpow.pop %v292
    %v294 = vmul.f32 %v290, 1.442695
    %v295 = vpow.pop %v294
    %v296 = vmul.f32 %v291, 1.442695
    %v297 = vpow.pop %v296
    %v298 = vadd.f32 %v284, %v293
    %v299 = vadd.f32 %v285, %v295
    %v300 = vadd.f32 %v286, %v297
    %s301 = smul.f32 %s145, 0.0625
    %v302 = vstv %s301
    %v303 = vmul.f32 %v246, %v302
    %v304 = vmul.f32 %v247, %v302
    %v305 = vmul.f32 %v248, %v302
    %v306 = vmul.f32 %v303, 1.442695
    %v307 = vpow.pop %v306
    %v308 = vmul.f32 %v304, 1.442695
    %v309 = vpow.pop %v308
    %v310 = vmul.f32 %v305, 1.442695
    %v311 = vpow.pop %v310
    %v312 = vadd.f32 %v298, %v307
    %v313 = vadd.f32 %v299, %v309
    %v314 = vadd.f32 %v300, %v311
    %v315 = vlaneseq
    %v316 = vshrl.u32 %v315, 7
    %v317 = vadd.s32 %v316, 8
    %v318 = vadd.s32 %v316, 16
    %vm319 = vcmp.lt.s32.totalorder %v316, 8
    %vm320 = vcmp.lt.s32.totalorder %v317, 8
    %vm321 = vcmp.lt.s32.totalorder %v318, 8
    %v322 = vlaneseq
    %v323 = vand.u32 %v322, 127
    %vm324 = vcmp.lt.s32.totalorder %v323, 8
    %v325 = vsel %vm319, 1, 0
    %v326 = vsel %vm320, 1, 0
    %v327 = vsel %vm321, 1, 0
    %vm328 = vcmp.eq.s32.totalorder %v325, 1
    %vm329 = vcmp.eq.s32.totalorder %v326, 1
    %vm330 = vcmp.eq.s32.totalorder %v327, 1
    %v331 = vsel %vm324, 1, 0
    %vm332 = vcmp.eq.s32.totalorder %v331, 1
    %vm333 = vmand %vm328, %vm332
    %vm334 = vmand %vm329, %vm332
    %vm335 = vmand %vm330, %vm332
    %v336 = vsel %vm333, %v312, 0.0
    %v337 = vsel %vm334, %v313, 0.0
    %v338 = vsel %vm335, %v314, 0.0
    %vm339 = vcmask 162816
    %v340 = vsel %vm339, %v336, 0.0
    %v341 = vsel %vm339, %v337, 0.0
    %v342 = vadd.f32 %v340, %v341
    %vm343 = vcmask 158720
    %v344 = vsel %vm343, %v338, 0.0
    %v345 = vadd.f32 %v342, %v344
    %346 = vadd.xlane.f32.xlu0 %v345
    %v347 = vpop.xlane.xlu0 %346
    %v348 = vrot.slane %v347, 4
    %v349 = vadd.f32 %v347, %v348
    %v350 = vrot.slane %v349, 2
    %v351 = vadd.f32 %v349, %v350
    %v352 = vrot.slane %v351, 1
    %v353 = vadd.f32 %v351, %v352
    %s354 = vtos %v353
    %vm355 = vmxor %vm319, 1
    %vm356 = vmxor %vm320, 1
    %vm357 = vmxor %vm321, 1
    %vm358 = vmxor %vm324, 1
    %v359 = vsel %vm355, 1, 0
    %v360 = vsel %vm356, 1, 0
    %v361 = vsel %vm357, 1, 0
    %vm362 = vcmp.eq.s32.totalorder %v359, 1
    %vm363 = vcmp.eq.s32.totalorder %v360, 1
    %vm364 = vcmp.eq.s32.totalorder %v361, 1
    %v365 = vsel %vm358, 1, 0
    %vm366 = vcmp.eq.s32.totalorder %v365, 1
    %vm367 = vmand %vm362, %vm366
    %vm368 = vmand %vm363, %vm366
    %vm369 = vmand %vm364, %vm366
    %v370 = vsel %vm367, %v312, 0.0
    %v371 = vsel %vm368, %v313, 0.0
    %v372 = vsel %vm369, %v314, 0.0
    %v373 = vsel %vm339, %v370, 0.0
    %v374 = vsel %vm339, %v371, 0.0
    %v375 = vadd.f32 %v373, %v374
    %v376 = vsel %vm343, %v372, 0.0
    %v377 = vadd.f32 %v375, %v376
    %378 = vadd.xlane.f32.xlu0 %v377
    %v379 = vpop.xlane.xlu0 %378
    %v380 = vrot.slane %v379, 4
    %v381 = vadd.f32 %v379, %v380
    %v382 = vrot.slane %v381, 2
    %v383 = vadd.f32 %v381, %v382
    %v384 = vrot.slane %v383, 1
    %v385 = vadd.f32 %v383, %v384
    %s386 = vtos %v385
    %v387 = vsel %vm339, %v312, 0.0
    %v388 = vsel %vm339, %v313, 0.0
    %v389 = vadd.f32 %v387, %v388
    %v390 = vsel %vm343, %v314, 0.0
    %v391 = vadd.f32 %v389, %v390
    %392 = vadd.xlane.f32.xlu0 %v391
    %v393 = vpop.xlane.xlu0 %392
    %v394 = vrot.slane %v393, 4
    %v395 = vadd.f32 %v393, %v394
    %v396 = vrot.slane %v395, 2
    %v397 = vadd.f32 %v395, %v396
    %v398 = vrot.slane %v397, 1
    %v399 = vadd.f32 %v397, %v398
    %s400 = vtos %v399
    %s401 = ssub.f32 %s400, %s354
    %s402 = ssub.f32 %s401, %s386
    %v403 = vrcp.pop 64.0
    %s404 = vtos %v403
    %s405 = smul.f32 %s354, %s404
    %v406 = vrcp.pop 144.0
    %s407 = vtos %v406
    %s408 = smul.f32 %s386, %s407
    %s409 = sadd.f32 %s405, %s408
    %v410 = vrcp.pop 96.0
    %s411 = vtos %v410
    %s412 = smul.f32 %s402, %s411
    %s413 = ssub.f32 %s409, %s412
    %s414 = scalar_lea.smem [#allocation5], 0
    %415 = sst [smem:[%s414]] %s413
    // Predicated region
    $region10: #{tpu_custom_call.1} parent=1 // pred_check
      _
    $region11: #{tpu_custom_call.1} parent=1 // pred_check_branch
      %417 = sbr.rel (0) target = $region13
    $region12: #{tpu_custom_call.1} parent=1 // pred_region
      %s419 = ssub.s32 16, 16
      %420 = vsyncadd [#allocation4], %s419
      %423 = dma.smem_to_hbm [#allocation5], 16, %s1, [#allocation4]
    $region13: #{tpu_custom_call.1} parent=1 // pred_fallthru
      _
    // Predicated region
    $region14: #{tpu_custom_call.1} parent=1 // pred_check
      _
    $region15: #{tpu_custom_call.1} parent=1 // pred_check_branch
      %425 = sbr.rel (0) target = $region17
    $region16: #{tpu_custom_call.1} parent=1 // pred_region
      %426 = dma.done [#allocation4], 16
    $region17: #{tpu_custom_call.1} parent=1 // pred_fallthru
      _
    %427 = sfence
    %428 = vsyncpa [#allocation3], 1
    %429 = vsyncpa [#allocation4], 1

</llo_original>
